<compile_context>
chip_gen: v7x
topology: tpu7x:2x2x1
jax: 0.10.0
libtpu: 0.0.40
codegen_flags: <defaults>
</compile_context>

<pallas_src>
import functools

import numpy as np
import jax
import jax.numpy as jnp
from jax.experimental import pallas as pl
from jax.experimental.pallas import tpu as pltpu

_SQRT_2PI = np.float32(np.sqrt(2.0 * np.pi))


def _gmm_kernel(params_ref, x_ref, out_ref, *, k):
    # params_ref : (3*K,) f32 in SMEM, layout [mu_0..mu_{K-1}, nhv_*, coef_*]
    # x_ref / out_ref : (block_rows, 128) f32 in VMEM
    x = x_ref[...]

    # Seed the accumulator with component 0 (saves one add/elem and avoids
    # materializing a zero block).
    d = x - params_ref[0]
    acc = params_ref[2 * k] * jnp.exp((d * d) * params_ref[k])

    # K is tiny and static -> unrolled at trace time; the component reduction
    # is a register accumulation (no cross-lane XLU reduce).
    for j in range(1, k):
        d = x - params_ref[j]
        acc = acc + params_ref[2 * k + j] * jnp.exp((d * d) * params_ref[k + j])

    out_ref[...] = acc


def gmm_prob(samples, weights, means, std, *, lanes=128, max_block_rows=2048):
    """samples: (N,) f32; weights/means/std: (K,) f32  ->  (N,) f32"""
    n = samples.shape[0]
    k = weights.shape[0]

    w = weights.astype(jnp.float32)
    mu = means.astype(jnp.float32)
    s = std.astype(jnp.float32)

    # Fold all divisions / normalization into K scalars (once, off the
    # per-element path):
    #   coef_k = w_k / (sum(w) * std_k * sqrt(2*pi)),  nhv_k = -0.5 / std_k^2
    coef = w / (jnp.sum(w) * s * _SQRT_2PI)
    nhv = jnp.float32(-0.5) / (s * s)
    params = jnp.concatenate([mu, nhv, coef])  # (3K,) -> one flat SMEM array

    # Lane-dense layout: pad only if N is not a multiple of the lane width.
    rows = -(-n // lanes)
    padded_n = rows * lanes
    x = samples.astype(jnp.float32)
    if padded_n != n:
        x = jnp.pad(x, (0, padded_n - n))
    x2 = x.reshape(rows, lanes)

    # Block-row selection:
    #   * big arrays: 2048-row (1 MiB) blocks to amortize grid-step overhead;
    #     the (possibly partial) last block is handled by Pallas, no padding.
    #   * medium arrays that split evenly: >=4 grid steps so v7x's second
    #     TensorCore gets work.
    #   * small arrays: one full-array block (legal even if rows % 8 != 0).
    if rows > max_block_rows:
        block_rows = max_block_rows          # multiple of 8
    elif rows >= 64 and rows % 32 == 0:
        block_rows = rows // 4               # multiple of 8, divides evenly
    else:
        block_rows = rows                    # full array dims

    grid = (pl.cdiv(rows, block_rows),)

    n_total = padded_n
    cost = pl.CostEstimate(
        flops=6 * k * n_total,
        transcendentals=k * n_total,
        bytes_accessed=8 * n_total,
    )

    out = pl.pallas_call(
        functools.partial(_gmm_kernel, k=k),
        out_shape=jax.ShapeDtypeStruct((rows, lanes), jnp.float32),
        grid_spec=pltpu.PrefetchScalarGridSpec(
            num_scalar_prefetch=0,
            grid=grid,
            in_specs=[
                # Packed K-length parameter vector in SMEM (scalar reads).
                pl.BlockSpec(memory_space=pltpu.MemorySpace.SMEM),
                # Lane-dense sample tile.
                pl.BlockSpec((block_rows, lanes), lambda i: (i, 0)),
            ],
            out_specs=pl.BlockSpec((block_rows, lanes), lambda i: (i, 0)),
        ),
        compiler_params=pltpu.CompilerParams(
            dimension_semantics=("parallel",),
            vmem_limit_bytes=32 * 1024 * 1024,
        ),
        cost_estimate=cost,
    )(params, x2)

    out_flat = out.reshape(padded_n)
    return out_flat if padded_n == n else out_flat[:n]


def gmm_prob_ref(samples, weights, means, std):
    """Pure-JAX reference mirroring the PyTorch forward."""
    w_norm = weights / weights.sum()
    z = (samples[:, None] - means[None]) / std[None]
    comp_prob = jnp.exp(-0.5 * z * z) / (std[None] * _SQRT_2PI)
    return (w_norm[None] * comp_prob).sum(1)


if __name__ == "__main__":
    key = jax.random.PRNGKey(0)
    k_s, k_w, k_m, k_d = jax.random.split(key, 4)

    N = 256   # number of samples
    K = 4     # number of mixture components

    samples = jax.random.normal(k_s, (N,), dtype=jnp.float32) * 3.0
    # Deterministic "parameters" (module __init__ takes them as arguments).
    weights = jax.random.uniform(k_w, (K,), dtype=jnp.float32, minval=0.1, maxval=1.0)
    means = jax.random.normal(k_m, (K,), dtype=jnp.float32) * 2.0
    std = jax.random.uniform(k_d, (K,), dtype=jnp.float32, minval=0.5, maxval=1.5)

    out = gmm_prob(samples, weights, means, std)
    out = jax.block_until_ready(out)

    ref = gmm_prob_ref(samples, weights, means, std)
    np.testing.assert_allclose(np.asarray(out), np.asarray(ref), rtol=1e-5, atol=1e-6)

    print("KERNEL_OK")
</pallas_src>

<mosaic_0001>
module attributes {stable_mosaic.version = 11 : i64} {
  func.func @_gmm_kernel(%arg0: i32, %arg1: memref<12xf32, #tpu.memory_space<smem>>, %arg2: memref<2x128xf32, #tpu.memory_space<vmem>>, %arg3: memref<2x128xf32, #tpu.memory_space<vmem>>) attributes {dimension_semantics = [#tpu.dimension_semantics<parallel>], iteration_bounds = array<i64: 1>, scalar_prefetch = 0 : i64, scratch_operands = 0 : i64, tpu.core_type = #tpu.core_type<tc>, window_params = [{transform_indices = @transform_0, window_bounds = array<i64: 12>}, {transform_indices = @transform_1, window_bounds = array<i64: 2, 128>}, {transform_indices = @transform_2, window_bounds = array<i64: 2, 128>}]} {
    %c0 = arith.constant 0 : index
    %c0_0 = arith.constant 0 : index
    %0 = vector.load %arg2[%c0, %c0_0] : memref<2x128xf32, #tpu.memory_space<vmem>>, vector<2x128xf32>
    %c0_1 = arith.constant 0 : index
    %1 = memref.load %arg1[%c0_1] : memref<12xf32, #tpu.memory_space<smem>>
    %2 = vector.broadcast %1 : f32 to vector<2x128xf32>
    %3 = arith.subf %0, %2 : vector<2x128xf32>
    %c8 = arith.constant 8 : index
    %4 = memref.load %arg1[%c8] : memref<12xf32, #tpu.memory_space<smem>>
    %5 = arith.mulf %3, %3 : vector<2x128xf32>
    %c4 = arith.constant 4 : index
    %6 = memref.load %arg1[%c4] : memref<12xf32, #tpu.memory_space<smem>>
    %7 = vector.broadcast %6 : f32 to vector<2x128xf32>
    %8 = arith.mulf %5, %7 : vector<2x128xf32>
    %9 = math.exp %8 : vector<2x128xf32>
    %10 = vector.broadcast %4 : f32 to vector<2x128xf32>
    %11 = arith.mulf %10, %9 : vector<2x128xf32>
    %c1 = arith.constant 1 : index
    %12 = memref.load %arg1[%c1] : memref<12xf32, #tpu.memory_space<smem>>
    %13 = vector.broadcast %12 : f32 to vector<2x128xf32>
    %14 = arith.subf %0, %13 : vector<2x128xf32>
    %c9 = arith.constant 9 : index
    %15 = memref.load %arg1[%c9] : memref<12xf32, #tpu.memory_space<smem>>
    %16 = arith.mulf %14, %14 : vector<2x128xf32>
    %c5 = arith.constant 5 : index
    %17 = memref.load %arg1[%c5] : memref<12xf32, #tpu.memory_space<smem>>
    %18 = vector.broadcast %17 : f32 to vector<2x128xf32>
    %19 = arith.mulf %16, %18 : vector<2x128xf32>
    %20 = math.exp %19 : vector<2x128xf32>
    %21 = vector.broadcast %15 : f32 to vector<2x128xf32>
    %22 = arith.mulf %21, %20 : vector<2x128xf32>
    %23 = arith.addf %11, %22 : vector<2x128xf32>
    %c2 = arith.constant 2 : index
    %24 = memref.load %arg1[%c2] : memref<12xf32, #tpu.memory_space<smem>>
    %25 = vector.broadcast %24 : f32 to vector<2x128xf32>
    %26 = arith.subf %0, %25 : vector<2x128xf32>
    %c10 = arith.constant 10 : index
    %27 = memref.load %arg1[%c10] : memref<12xf32, #tpu.memory_space<smem>>
    %28 = arith.mulf %26, %26 : vector<2x128xf32>
    %c6 = arith.constant 6 : index
    %29 = memref.load %arg1[%c6] : memref<12xf32, #tpu.memory_space<smem>>
    %30 = vector.broadcast %29 : f32 to vector<2x128xf32>
    %31 = arith.mulf %28, %30 : vector<2x128xf32>
    %32 = math.exp %31 : vector<2x128xf32>
    %33 = vector.broadcast %27 : f32 to vector<2x128xf32>
    %34 = arith.mulf %33, %32 : vector<2x128xf32>
    %35 = arith.addf %23, %34 : vector<2x128xf32>
    %c3 = arith.constant 3 : index
    %36 = memref.load %arg1[%c3] : memref<12xf32, #tpu.memory_space<smem>>
    %37 = vector.broadcast %36 : f32 to vector<2x128xf32>
    %38 = arith.subf %0, %37 : vector<2x128xf32>
    %c11 = arith.constant 11 : index
    %39 = memref.load %arg1[%c11] : memref<12xf32, #tpu.memory_space<smem>>
    %40 = arith.mulf %38, %38 : vector<2x128xf32>
    %c7 = arith.constant 7 : index
    %41 = memref.load %arg1[%c7] : memref<12xf32, #tpu.memory_space<smem>>
    %42 = vector.broadcast %41 : f32 to vector<2x128xf32>
    %43 = arith.mulf %40, %42 : vector<2x128xf32>
    %44 = math.exp %43 : vector<2x128xf32>
    %45 = vector.broadcast %39 : f32 to vector<2x128xf32>
    %46 = arith.mulf %45, %44 : vector<2x128xf32>
    %47 = arith.addf %35, %46 : vector<2x128xf32>
    %c0_2 = arith.constant 0 : index
    %c0_3 = arith.constant 0 : index
    %48 = vector.load %arg3[%c0_2, %c0_3] : memref<2x128xf32, #tpu.memory_space<vmem>>, vector<2x128xf32>
    tpu.vector_store %arg3[%c0_2, %c0_3], %47 {strides = array<i32>} : memref<2x128xf32, #tpu.memory_space<vmem>>, vector<2x128xf32>,
    return
  }
  func.func @transform_0(%arg0: i32) -> i32 {
    %c0_i32 = arith.constant 0 : i32
    %c0_i32_0 = arith.constant 0 : i32
    return %c0_i32 : i32
  }
  func.func @transform_1(%arg0: i32) -> (i32, i32) {
    %c0_i32 = arith.constant 0 : i32
    %c0_i32_0 = arith.constant 0 : i32
    return %arg0, %c0_i32 : i32, i32
  }
  func.func @transform_2(%arg0: i32) -> (i32, i32) {
    %c0_i32 = arith.constant 0 : i32
    %c0_i32_0 = arith.constant 0 : i32
    return %arg0, %c0_i32 : i32, i32
  }
}

</mosaic_0001>

<llo_original>
// kernel: tpu_custom_call.1
$region0: #{tpu_custom_call.1}
  #allocation0 [shape = 'u32[]', space=smem, size = 0x4, offset = 0x4, fixed_abs, tag = 'smem constant byte address 0x4 - core index']
  #allocation1 [shape = 'u32[144,128]{1,0:T(1,128)}', space=vmem, size = 0x12000, scoped, tag = 'internal scratch']
  %s0 = inlined_call_operand.hbm [shape: f32[12], index: 0, kind: input, shape index: {}]
  %s1 = inlined_call_operand.vmem [shape: f32[2,128], index: 1, kind: input, shape index: {}]
  %s2 = inlined_call_operand.hbm [shape: f32[2,128], index: 2, kind: output, shape index: {}]
  %s3 = sld [smem:[#allocation0]]
  $region22: #{tpu_custom_call.1} parent=0
    _
  %s5 = ssub.s32 1, %s3
  %s6 = scalar_select 0, %s5, %s3
  $region1: #{tpu_custom_call.1} parent=0
    #allocation2 [shape = 'u8[512]{0}', space=smem, size = 0x200, scoped, tag = 'input window, operand 0, single buffered']
    #allocation3 [shape = 's32[1]{0}', space=sflag, size = 0x4, scoped, tag = 'scoped memory for tpu_custom_call.1']
    #allocation4 [shape = 's32[1]{0}', space=sflag, size = 0x4, scoped, tag = 'scoped memory for tpu_custom_call.1']
    #allocation5 [shape = 'u8[1024]{0}', space=vmem, size = 0x400, scoped, tag = 'output window, operand 0, single buffered']
    %7 = vsyncpa [#allocation4], 0
    %8 = vsyncpa [#allocation3], 0
    // Predicated region
    $region2: #{tpu_custom_call.1} parent=1 // pred_check
      _
    $region3: #{tpu_custom_call.1} parent=1 // pred_check_branch
      %10 = sbr.rel (0) target = $region5
    $region4: #{tpu_custom_call.1} parent=1 // pred_region
      %s12 = ssub.s32 16, 16
      %13 = vsyncadd [#allocation4], %s12
      %16 = dma.hbm_to_smem %s0, 16, [#allocation2], [#allocation4]
    $region5: #{tpu_custom_call.1} parent=1 // pred_fallthru
      _
    // Predicated region
    $region6: #{tpu_custom_call.1} parent=1 // pred_check
      _
    $region7: #{tpu_custom_call.1} parent=1 // pred_check_branch
      %18 = sbr.rel (0) target = $region9
    $region8: #{tpu_custom_call.1} parent=1 // pred_region
      _
    $region9: #{tpu_custom_call.1} parent=1 // pred_fallthru
      _
    // Predicated region
    $region10: #{tpu_custom_call.1} parent=1 // pred_check
      _
    $region11: #{tpu_custom_call.1} parent=1 // pred_check_branch
      %20 = sbr.rel (0) target = $region13
    $region12: #{tpu_custom_call.1} parent=1 // pred_region
      %21 = dma.done [#allocation4], 16
    $region13: #{tpu_custom_call.1} parent=1 // pred_fallthru
      _
    %22 = sfence
    %v23 = vld [vmem:[%s1] sm:$0x3]
    %s24 = sld [smem:[#allocation2]]
    %v25 = vstv %s24
    %v26 = vsub.f32 %v23, %v25
    %s27 = sld [smem:[#allocation2 + $0x8]]
    %v28 = vmul.f32 %v26, %v26
    %s29 = sld [smem:[#allocation2 + $0x4]]
    %v30 = vstv %s29
    %v31 = vmul.f32 %v28, %v30
    %v32 = vmul.f32 %v31, 1.442695
    %v33 = vpow.pop %v32
    %v34 = vstv %s27
    %v35 = vmul.f32 %v34, %v33
    %s36 = sld [smem:[#allocation2 + $0x1]]
    %v37 = vstv %s36
    %v38 = vsub.f32 %v23, %v37
    %s39 = sld [smem:[#allocation2 + $0x9]]
    %v40 = vmul.f32 %v38, %v38
    %s41 = sld [smem:[#allocation2 + $0x5]]
    %v42 = vstv %s41
    %v43 = vmul.f32 %v40, %v42
    %v44 = vmul.f32 %v43, 1.442695
    %v45 = vpow.pop %v44
    %v46 = vstv %s39
    %v47 = vmul.f32 %v46, %v45
    %v48 = vadd.f32 %v35, %v47
    %s49 = sld [smem:[#allocation2 + $0x2]]
    %v50 = vstv %s49
    %v51 = vsub.f32 %v23, %v50
    %s52 = sld [smem:[#allocation2 + $0xa]]
    %v53 = vmul.f32 %v51, %v51
    %s54 = sld [smem:[#allocation2 + $0x6]]
    %v55 = vstv %s54
    %v56 = vmul.f32 %v53, %v55
    %v57 = vmul.f32 %v56, 1.442695
    %v58 = vpow.pop %v57
    %v59 = vstv %s52
    %v60 = vmul.f32 %v59, %v58
    %v61 = vadd.f32 %v48, %v60
    %s62 = sld [smem:[#allocation2 + $0x3]]
    %v63 = vstv %s62
    %v64 = vsub.f32 %v23, %v63
    %s65 = sld [smem:[#allocation2 + $0xb]]
    %v66 = vmul.f32 %v64, %v64
    %s67 = sld [smem:[#allocation2 + $0x7]]
    %v68 = vstv %s67
    %v69 = vmul.f32 %v66, %v68
    %v70 = vmul.f32 %v69, 1.442695
    %v71 = vpow.pop %v70
    %v72 = vstv %s65
    %v73 = vmul.f32 %v72, %v71
    %v74 = vadd.f32 %v61, %v73
    %75 = vst [vmem:[#allocation5] sm:$0x3] %v74
    // Predicated region
    $region14: #{tpu_custom_call.1} parent=1 // pred_check
      _
    $region15: #{tpu_custom_call.1} parent=1 // pred_check_branch
      %77 = sbr.rel (0) target = $region17
    $region16: #{tpu_custom_call.1} parent=1 // pred_region
      %s79 = ssub.s32 32, 32
      %80 = vsyncadd [#allocation3], %s79
      %s82 = sshll.u32 [#allocation5], 4
      %s83 = int_to_ptr.vmem [resolvable:$true] %s82
      %85 = dma.vmem_to_hbm [thread:$0]  %s83, 32, %s2, [#allocation3]
    $region17: #{tpu_custom_call.1} parent=1 // pred_fallthru
      _
    // Predicated region
    $region18: #{tpu_custom_call.1} parent=1 // pred_check
      _
    $region19: #{tpu_custom_call.1} parent=1 // pred_check_branch
      %87 = sbr.rel (0) target = $region21
    $region20: #{tpu_custom_call.1} parent=1 // pred_region
      %88 = dma.done [#allocation3], 32
    $region21: #{tpu_custom_call.1} parent=1 // pred_fallthru
      _
    %89 = vsyncpa [#allocation3], 1
    %90 = vsyncpa [#allocation4], 1

</llo_original>
